<compile_context>
chip_gen: v7x
topology: tpu7x:2x2x1
jax: 0.10.0
libtpu: 0.0.40
codegen_flags: <defaults>
</compile_context>

<pallas_src>
import functools

import jax
import jax.numpy as jnp
from jax.experimental import pallas as pl
from jax.experimental.pallas import tpu as pltpu

EPS = 1e-6
DROPOUT_P = 0.1
_MiB = 1024 * 1024


# --------------------------------------------------------------------------------------
# Kernels
# --------------------------------------------------------------------------------------
def _norm_sublayer(x, a2, b2, w_bf16, bias):
    """LayerNorm (unbiased std, eps added to std — matches the module's custom LayerNorm)
    followed by the Linear(D, D) sublayer on the MXU (bf16 operands, f32 accumulation).

    Row mean and sum-of-squares are computed in one fused pass so the XLU does a single
    reduction sweep; one reciprocal per row is reused for the whole row.
    """
    d = x.shape[-1]
    s1 = jnp.sum(x, axis=-1, keepdims=True)
    s2 = jnp.sum(x * x, axis=-1, keepdims=True)
    mean = s1 * (1.0 / d)
    var_u = jnp.maximum((s2 - s1 * mean) * (1.0 / (d - 1)), 0.0)   # unbiased, clamp >= 0
    inv = 1.0 / (jnp.sqrt(var_u) + EPS)
    y = a2 * ((x - mean) * inv) + b2
    s = jnp.dot(y.astype(jnp.bfloat16), w_bf16,
                preferred_element_type=jnp.float32) + bias
    return s


def _kernel_dropout(x_ref, bits_ref, a2_ref, b2_ref, w_ref, bias_ref, o_ref,
                    *, keep_threshold, keep_scale):
    # x_ref: (TILE_N, D) f32    bits_ref: (TILE_N, D) u8
    # a2/b2/bias: (1, D) f32 resident    w_ref: (D, D) bf16 resident
    x = x_ref[...]
    s = _norm_sublayer(x, a2_ref[...], b2_ref[...], w_ref[...], bias_ref[...])
    # Inverted dropout from streamed uint8 bits: drop iff bits < round(p * 256).
    r = bits_ref[...].astype(jnp.float32)
    keep = r >= jnp.float32(keep_threshold)
    o_ref[...] = x + jnp.where(keep, s * jnp.float32(keep_scale), jnp.float32(0.0))


def _kernel_nodrop(x_ref, a2_ref, b2_ref, w_ref, bias_ref, o_ref):
    x = x_ref[...]
    s = _norm_sublayer(x, a2_ref[...], b2_ref[...], w_ref[...], bias_ref[...])
    o_ref[...] = x + s


# --------------------------------------------------------------------------------------
# VMEM planning
# --------------------------------------------------------------------------------------
def _round_up(v, m):
    return ((v + m - 1) // m) * m


def _vmem_capacity_bytes():
    try:
        cap = int(pltpu.get_tpu_info().vmem_capacity_bytes)
        if cap > 0:
            return cap
    except Exception:
        pass
    return 64 * _MiB                      # conservative default = v7x per-TC VMEM


def _vmem_plan():
    cap = _vmem_capacity_bytes()
    vmem_limit = max(32 * _MiB, cap - 16 * _MiB)   # 48 MiB on v7x, 112 MiB on v5e/v6e
    tile_budget = vmem_limit - 10 * _MiB           # headroom for compiler scratch/spills
    return int(vmem_limit), int(tile_budget)


def _choose_tile_rows(n_rows, d, tile_budget_bytes, *, with_bits):
    """Largest row-tile whose (double-buffered) working set fits the VMEM budget."""
    # Resident operands are still double-buffered by the pipeline:
    #   bf16 weight: 2 bufs * 2 B * D*D;  three (1, D) f32 vectors: 2 bufs * 4 B each.
    resident = 4 * d * d + 24 * d
    # Per row of a tile per step: x f32 (2 bufs) + out f32 (2 bufs) [+ bits u8 (2 bufs)]
    # plus ~6 f32-tile intermediates (diff, y, s, mask, ...) and one bf16 tile.
    per_row = ((18 if with_bits else 16) + 26) * d
    tile = (tile_budget_bytes - resident) // per_row
    tile = max(32, min(tile, 4096))
    if tile >= 256:
        tile = (tile // 256) * 256        # whole MXU passes, no ragged vreg edges
    else:
        tile = (tile // 32) * 32          # keep u8 bits tiles sublane-packed
    if tile >= n_rows:                    # one step covers everything
        tile = _round_up(n_rows, 8)
    return max(tile, 8)


# --------------------------------------------------------------------------------------
# Wrapper
# --------------------------------------------------------------------------------------
def sublayer_connection(x, a2, b2, w, bias, dropout_key=None, *,
                        dropout_p=DROPOUT_P, training=True):
    """x: (B, S, D) f32.  a2, b2, bias: (D,).  w: (D, D).  dropout_key: jax PRNG key."""
    B, S, D = x.shape
    N = B * S
    x2 = x.reshape(N, D).astype(jnp.float32)
    p = float(dropout_p) if training else 0.0
    with_bits = p > 0.0

    vmem_limit, tile_budget = _vmem_plan()
    tile_n = _choose_tile_rows(N, D, tile_budget, with_bits=with_bits)
    grid = (pl.cdiv(N, tile_n),)

    row_spec = pl.BlockSpec((tile_n, D), lambda i: (i, 0))   # pipelined row tiles
    vec_spec = pl.BlockSpec((1, D), lambda i: (0, 0))        # resident (1, D) vectors
    w_spec = pl.BlockSpec((D, D), lambda i: (0, 0))          # resident bf16 weight
    # TODO(synk): for D large enough that the resident bf16 weight blows the VMEM budget,
    # switch to a K/N-blocked grid over the Linear with an accumulator scratch instead of
    # keeping the weight fully resident.

    compiler_params = pltpu.CompilerParams(
        dimension_semantics=("parallel",),       # shards rows across v7x's 2 TCs
        vmem_limit_bytes=vmem_limit,
    )

    a2v = a2.reshape(1, D).astype(jnp.float32)
    b2v = b2.reshape(1, D).astype(jnp.float32)
    wv = w.astype(jnp.bfloat16)
    biasv = bias.reshape(1, D).astype(jnp.float32)

    if not with_bits:
        # Inference / p == 0: no dropout bits generated or streamed at all.
        out = pl.pallas_call(
            _kernel_nodrop,
            out_shape=jax.ShapeDtypeStruct((N, D), jnp.float32),
            grid=grid,
            in_specs=[row_spec, vec_spec, vec_spec, w_spec, vec_spec],
            out_specs=row_spec,
            compiler_params=compiler_params,
        )(x2, a2v, b2v, wv, biasv)
        return out.reshape(B, S, D)

    # TODO(synk): on real hardware the dropout bits could be drawn in-kernel
    # (pltpu.prng_seed(seed + pl.program_id(0)) + pltpu.prng_random_bits) to remove this
    # HBM stream entirely; those primitives do not lower in this sandbox's interpret
    # path, so uniform uint8 bits (1 B/elem vs the previous 4 B/elem uint32 stream) are
    # generated once in the wrapper instead.  PyTorch's dropout RNG stream cannot be
    # reproduced bit-exactly either way.
    if dropout_key is None:
        dropout_key = jax.random.PRNGKey(0)
    bits = jax.random.bits(dropout_key, (N, D), dtype=jnp.uint8)
    keep_threshold = float(round(p * 256.0))     # drop iff bits < thr (compare done in f32)
    keep_scale = 1.0 / (1.0 - p)

    kernel = functools.partial(_kernel_dropout,
                               keep_threshold=keep_threshold,
                               keep_scale=keep_scale)
    out = pl.pallas_call(
        kernel,
        out_shape=jax.ShapeDtypeStruct((N, D), jnp.float32),
        grid=grid,
        in_specs=[row_spec, row_spec, vec_spec, vec_spec, w_spec, vec_spec],
        out_specs=row_spec,
        compiler_params=compiler_params,
    )(x2, bits, a2v, b2v, wv, biasv)
    return out.reshape(B, S, D)


# --------------------------------------------------------------------------------------
# Pure-JAX reference (same numerics: bf16 matmul, u8 threshold dropout)
# --------------------------------------------------------------------------------------
def _reference(x, a2, b2, w, bias, bits_u8, p):
    mean = jnp.mean(x, axis=-1, keepdims=True)
    diff = x - mean
    var_u = jnp.sum(diff * diff, axis=-1, keepdims=True) / float(x.shape[-1] - 1)
    y = a2 * diff / (jnp.sqrt(var_u) + EPS) + b2
    s = jnp.dot(y.astype(jnp.bfloat16), w.astype(jnp.bfloat16),
                preferred_element_type=jnp.float32) + bias
    if p <= 0.0:
        return x + s
    thr = float(round(p * 256.0))
    keep = bits_u8.astype(jnp.float32) >= thr
    return x + jnp.where(keep, s / (1.0 - p), 0.0)


if __name__ == "__main__":
    B, S, D = 2, 8, 32   # NOTE: D=32 < 128 lane width -> layout-bound for the toy shape.

    key = jax.random.PRNGKey(0)
    kx, kw, kd = jax.random.split(key, 3)

    x = jax.random.normal(kx, (B, S, D), dtype=jnp.float32)

    # Deterministic parameter init (module __init__ shapes):
    #   LayerNorm: a2 = ones(D), b2 = zeros(D)
    #   sublayer Linear(D, D): small deterministic weights, zero bias
    a2 = jnp.ones((D,), dtype=jnp.float32)
    b2 = jnp.zeros((D,), dtype=jnp.float32)
    w = jax.random.normal(kw, (D, D), dtype=jnp.float32) * 0.05
    bias = jnp.zeros((D,), dtype=jnp.float32)

    out = sublayer_connection(x, a2, b2, w, bias, kd, dropout_p=DROPOUT_P, training=True)
    jax.block_until_ready(out)
    assert out.shape == (B, S, D) and out.dtype == jnp.float32

    # Correctness check against a pure-JAX reference using the same dropout bits.
    bits_ref = jax.random.bits(kd, (B * S, D), dtype=jnp.uint8).reshape(B, S, D)
    ref = _reference(x, a2, b2, w, bias, bits_ref, DROPOUT_P)
    assert bool(jnp.all(jnp.isfinite(out)))
    assert bool(jnp.allclose(out, ref, atol=1e-2, rtol=1e-2))

    # Also exercise the no-dropout (inference) fast path once.
    out_eval = sublayer_connection(x, a2, b2, w, bias, None,
                                   dropout_p=DROPOUT_P, training=False)
    jax.block_until_ready(out_eval)
    ref_eval = _reference(x, a2, b2, w, bias, bits_ref, 0.0)
    assert bool(jnp.allclose(out_eval, ref_eval, atol=1e-2, rtol=1e-2))

    print("KERNEL_OK")
</pallas_src>

<mosaic_0001>
module attributes {stable_mosaic.version = 11 : i64} {
  func.func @_kernel_dropout(%arg0: i32, %arg1: memref<16x32xf32, #tpu.memory_space<vmem>>, %arg2: memref<16x32xi8, #tpu.memory_space<vmem>>, %arg3: memref<1x32xf32, #tpu.memory_space<vmem>>, %arg4: memref<1x32xf32, #tpu.memory_space<vmem>>, %arg5: memref<32x32xbf16, #tpu.memory_space<vmem>>, %arg6: memref<1x32xf32, #tpu.memory_space<vmem>>, %arg7: memref<16x32xf32, #tpu.memory_space<vmem>>) attributes {dimension_semantics = [#tpu.dimension_semantics<parallel>], iteration_bounds = array<i64: 1>, scalar_prefetch = 0 : i64, scratch_operands = 0 : i64, tpu.core_type = #tpu.core_type<tc>, window_params = [{transform_indices = @transform_0, window_bounds = array<i64: 16, 32>}, {transform_indices = @transform_1, window_bounds = array<i64: 16, 32>}, {pipeline_mode = #tpu.pipeline_mode<synchronous>, transform_indices = @transform_2, window_bounds = array<i64: 1, 32>}, {pipeline_mode = #tpu.pipeline_mode<synchronous>, transform_indices = @transform_3, window_bounds = array<i64: 1, 32>}, {pipeline_mode = #tpu.pipeline_mode<synchronous>, transform_indices = @transform_4, window_bounds = array<i64: 32, 32>}, {pipeline_mode = #tpu.pipeline_mode<synchronous>, transform_indices = @transform_5, window_bounds = array<i64: 1, 32>}, {transform_indices = @transform_6, window_bounds = array<i64: 16, 32>}]} {
    %c0 = arith.constant 0 : index
    %c0_0 = arith.constant 0 : index
    %0 = vector.load %arg1[%c0, %c0_0] : memref<16x32xf32, #tpu.memory_space<vmem>>, vector<16x32xf32>
    %c0_1 = arith.constant 0 : index
    %c0_2 = arith.constant 0 : index
    %1 = vector.load %arg3[%c0_1, %c0_2] : memref<1x32xf32, #tpu.memory_space<vmem>>, vector<1x32xf32>
    %c0_3 = arith.constant 0 : index
    %c0_4 = arith.constant 0 : index
    %2 = vector.load %arg4[%c0_3, %c0_4] : memref<1x32xf32, #tpu.memory_space<vmem>>, vector<1x32xf32>
    %c0_5 = arith.constant 0 : index
    %c0_6 = arith.constant 0 : index
    %3 = vector.load %arg5[%c0_5, %c0_6] : memref<32x32xbf16, #tpu.memory_space<vmem>>, vector<32x32xbf16>
    %c0_7 = arith.constant 0 : index
    %c0_8 = arith.constant 0 : index
    %4 = vector.load %arg6[%c0_7, %c0_8] : memref<1x32xf32, #tpu.memory_space<vmem>>, vector<1x32xf32>
    %cst = arith.constant dense<0.000000e+00> : vector<16xf32>
    %5 = vector.multi_reduction <add>, %0, %cst [1] : vector<16x32xf32> to vector<16xf32>
    %6 = vector.shape_cast %5 : vector<16xf32> to vector<16x1xf32>
    %7 = arith.mulf %0, %0 : vector<16x32xf32>
    %cst_9 = arith.constant dense<0.000000e+00> : vector<16xf32>
    %8 = vector.multi_reduction <add>, %7, %cst_9 [1] : vector<16x32xf32> to vector<16xf32>
    %9 = vector.shape_cast %8 : vector<16xf32> to vector<16x1xf32>
    %cst_10 = arith.constant 3.125000e-02 : f32
    %10 = vector.broadcast %cst_10 : f32 to vector<16x1xf32>
    %11 = arith.mulf %6, %10 : vector<16x1xf32>
    %12 = arith.mulf %6, %11 : vector<16x1xf32>
    %13 = arith.subf %9, %12 : vector<16x1xf32>
    %cst_11 = arith.constant 0.0322580636 : f32
    %14 = vector.broadcast %cst_11 : f32 to vector<16x1xf32>
    %15 = arith.mulf %13, %14 : vector<16x1xf32>
    %cst_12 = arith.constant 0.000000e+00 : f32
    %16 = vector.broadcast %cst_12 : f32 to vector<16x1xf32>
    %17 = arith.maximumf %15, %16 : vector<16x1xf32>
    %18 = math.sqrt %17 : vector<16x1xf32>
    %cst_13 = arith.constant 9.99999997E-7 : f32
    %19 = vector.broadcast %cst_13 : f32 to vector<16x1xf32>
    %20 = arith.addf %18, %19 : vector<16x1xf32>
    %cst_14 = arith.constant 1.000000e+00 : f32
    %21 = vector.broadcast %cst_14 : f32 to vector<16x1xf32>
    %22 = arith.divf %21, %20 : vector<16x1xf32>
    %23 = vector.broadcast %11 : vector<16x1xf32> to vector<16x32xf32>
    %24 = arith.subf %0, %23 : vector<16x32xf32>
    %25 = vector.broadcast %22 : vector<16x1xf32> to vector<16x32xf32>
    %26 = arith.mulf %24, %25 : vector<16x32xf32>
    %27 = vector.broadcast %1 : vector<1x32xf32> to vector<16x32xf32>
    %28 = arith.mulf %27, %26 : vector<16x32xf32>
    %29 = vector.broadcast %2 : vector<1x32xf32> to vector<16x32xf32>
    %30 = arith.addf %28, %29 : vector<16x32xf32>
    %31 = arith.truncf %30 : vector<16x32xf32> to vector<16x32xbf16>
    %cst_15 = arith.constant dense<0.000000e+00> : vector<16x32xf32>
    %32 = tpu.matmul %31, %3, %cst_15 {dimension_numbers = #tpu.dot_dimension_numbers<[1], [0], [0], [1], [0, 0, 1, 1], [], []>} : vector<16x32xbf16>, vector<32x32xbf16>, vector<16x32xf32> -> vector<16x32xf32>
    %33 = vector.broadcast %4 : vector<1x32xf32> to vector<16x32xf32>
    %34 = arith.addf %32, %33 : vector<16x32xf32>
    %c0_16 = arith.constant 0 : index
    %c0_17 = arith.constant 0 : index
    %35 = vector.load %arg2[%c0_16, %c0_17] : memref<16x32xi8, #tpu.memory_space<vmem>>, vector<16x32xi8>
    %36 = arith.uitofp %35 : vector<16x32xi8> to vector<16x32xf32>
    %cst_18 = arith.constant 2.600000e+01 : f32
    %37 = vector.broadcast %cst_18 : f32 to vector<16x32xf32>
    %38 = arith.cmpf oge, %36, %37 : vector<16x32xf32>
    %cst_19 = arith.constant 1.11111116 : f32
    %39 = vector.broadcast %cst_19 : f32 to vector<16x32xf32>
    %40 = arith.mulf %34, %39 : vector<16x32xf32>
    %cst_20 = arith.constant 0.000000e+00 : f32
    %41 = vector.broadcast %cst_20 : f32 to vector<16x32xf32>
    %42 = arith.select %38, %40, %41 : vector<16x32xi1>, vector<16x32xf32>
    %43 = arith.addf %0, %42 : vector<16x32xf32>
    %c0_21 = arith.constant 0 : index
    %c0_22 = arith.constant 0 : index
    %44 = vector.load %arg7[%c0_21, %c0_22] : memref<16x32xf32, #tpu.memory_space<vmem>>, vector<16x32xf32>
    tpu.vector_store %arg7[%c0_21, %c0_22], %43 {strides = array<i32>} : memref<16x32xf32, #tpu.memory_space<vmem>>, vector<16x32xf32>,
    return
  }
  func.func @transform_0(%arg0: i32) -> (i32, i32) {
    %c0_i32 = arith.constant 0 : i32
    %c0_i32_0 = arith.constant 0 : i32
    return %arg0, %c0_i32 : i32, i32
  }
  func.func @transform_1(%arg0: i32) -> (i32, i32) {
    %c0_i32 = arith.constant 0 : i32
    %c0_i32_0 = arith.constant 0 : i32
    return %arg0, %c0_i32 : i32, i32
  }
  func.func @transform_2(%arg0: i32) -> (i32, i32) {
    %c0_i32 = arith.constant 0 : i32
    %c0_i32_0 = arith.constant 0 : i32
    %c0_i32_1 = arith.constant 0 : i32
    return %c0_i32, %c0_i32_0 : i32, i32
  }
  func.func @transform_3(%arg0: i32) -> (i32, i32) {
    %c0_i32 = arith.constant 0 : i32
    %c0_i32_0 = arith.constant 0 : i32
    %c0_i32_1 = arith.constant 0 : i32
    return %c0_i32, %c0_i32_0 : i32, i32
  }
  func.func @transform_4(%arg0: i32) -> (i32, i32) {
    %c0_i32 = arith.constant 0 : i32
    %c0_i32_0 = arith.constant 0 : i32
    %c0_i32_1 = arith.constant 0 : i32
    return %c0_i32, %c0_i32_0 : i32, i32
  }
  func.func @transform_5(%arg0: i32) -> (i32, i32) {
    %c0_i32 = arith.constant 0 : i32
    %c0_i32_0 = arith.constant 0 : i32
    %c0_i32_1 = arith.constant 0 : i32
    return %c0_i32, %c0_i32_0 : i32, i32
  }
  func.func @transform_6(%arg0: i32) -> (i32, i32) {
    %c0_i32 = arith.constant 0 : i32
    %c0_i32_0 = arith.constant 0 : i32
    return %arg0, %c0_i32 : i32, i32
  }
}

</mosaic_0001>

<llo_original>
// kernel: tpu_custom_call.1
$region0: #{tpu_custom_call.1}
  #allocation0 [shape = 'u32[]', space=smem, size = 0x4, offset = 0x4, fixed_abs, tag = 'smem constant byte address 0x4 - core index']
  #allocation1 [shape = 'u32[144,128]{1,0:T(1,128)}', space=vmem, size = 0x12000, scoped, tag = 'internal scratch']
  %s0 = inlined_call_operand.hbm [shape: f32[16,32], index: 0, kind: input, shape index: {}]
  %s1 = inlined_call_operand.hbm [shape: u8[16,32], index: 1, kind: input, shape index: {}]
  %s2 = inlined_call_operand.vmem [shape: f32[1,32], index: 2, kind: input, shape index: {}]
  %s3 = inlined_call_operand.vmem [shape: f32[1,32], index: 3, kind: input, shape index: {}]
  %s4 = inlined_call_operand.hbm [shape: bf16[32,32], index: 4, kind: input, shape index: {}]
  %s5 = inlined_call_operand.vmem [shape: f32[1,32], index: 5, kind: input, shape index: {}]
  %s6 = inlined_call_operand.hbm [shape: f32[16,32], index: 6, kind: output, shape index: {}]
  %s7 = sld [smem:[#allocation0]]
  $region46: #{tpu_custom_call.1} parent=0
    _
  %s9 = ssub.s32 1, %s7
  %s10 = scalar_select 0, %s9, %s7
  $region1: #{tpu_custom_call.1} parent=0
    #allocation2 [shape = 'u8[8192]{0}', space=vmem, size = 0x2000, scoped, tag = 'input window, operand 0, single buffered']
    #allocation3 [shape = 's32[1]{0}', space=sflag, size = 0x4, scoped, tag = 'scoped memory for tpu_custom_call.1']
    #allocation4 [shape = 's32[1]{0}', space=sflag, size = 0x4, scoped, tag = 'scoped memory for tpu_custom_call.1']
    #allocation5 [shape = 'u8[2048]{0}', space=vmem, size = 0x800, scoped, tag = 'input window, operand 1, single buffered']
    #allocation6 [shape = 's32[1]{0}', space=sflag, size = 0x4, scoped, tag = 'scoped memory for tpu_custom_call.1']
    #allocation7 [shape = 'u8[8192]{0}', space=vmem, size = 0x2000, scoped, tag = 'input window, operand 4, single buffered']
    #allocation8 [shape = 'u8[8192]{0}', space=vmem, size = 0x2000, scoped, tag = 'output window, operand 0, single buffered']
    %11 = vsyncpa [#allocation3], 0
    %12 = vsyncpa [#allocation6], 0
    %13 = vsyncpa [#allocation4], 0
    // Predicated region
    $region2: #{tpu_custom_call.1} parent=1 // pred_check
      _
    $region3: #{tpu_custom_call.1} parent=1 // pred_check_branch
      %15 = sbr.rel (0) target = $region5
    $region4: #{tpu_custom_call.1} parent=1 // pred_region
      %s17 = ssub.s32 256, 256
      %18 = vsyncadd [#allocation3], %s17
      %s19 = sshll.u32 [#allocation2], 4
      %s20 = int_to_ptr.vmem [resolvable:$true] %s19
      %25 = dma.hbm_to_vmem [thread:$0]  %s0, 256, %s20, [#allocation3], 128, 128, 8
    $region5: #{tpu_custom_call.1} parent=1 // pred_fallthru
      _
    // Predicated region
    $region6: #{tpu_custom_call.1} parent=1 // pred_check
      _
    $region7: #{tpu_custom_call.1} parent=1 // pred_check_branch
      %27 = sbr.rel (0) target = $region9
    $region8: #{tpu_custom_call.1} parent=1 // pred_region
      %s29 = ssub.s32 64, 64
      %30 = vsyncadd [#allocation6], %s29
      %s31 = sshll.u32 [#allocation5], 4
      %s32 = int_to_ptr.vmem [resolvable:$true] %s31
      %37 = dma.hbm_to_vmem [thread:$0]  %s1, 64, %s32, [#allocation6], 32, 32, 2
    $region9: #{tpu_custom_call.1} parent=1 // pred_fallthru
      _
    // Predicated region
    $region10: #{tpu_custom_call.1} parent=1 // pred_check
      _
    $region11: #{tpu_custom_call.1} parent=1 // pred_check_branch
      %39 = sbr.rel (0) target = $region13
    $region12: #{tpu_custom_call.1} parent=1 // pred_region
      _
    $region13: #{tpu_custom_call.1} parent=1 // pred_fallthru
      _
    // Predicated region
    $region14: #{tpu_custom_call.1} parent=1 // pred_check
      _
    $region15: #{tpu_custom_call.1} parent=1 // pred_check_branch
      %41 = sbr.rel (0) target = $region17
    $region16: #{tpu_custom_call.1} parent=1 // pred_region
      _
    $region17: #{tpu_custom_call.1} parent=1 // pred_fallthru
      _
    // Predicated region
    $region18: #{tpu_custom_call.1} parent=1 // pred_check
      _
    $region19: #{tpu_custom_call.1} parent=1 // pred_check_branch
      %43 = sbr.rel (0) target = $region21
    $region20: #{tpu_custom_call.1} parent=1 // pred_region
      %s45 = ssub.s32 256, 256
      %46 = vsyncadd [#allocation6], %s45
      %s47 = sshll.u32 [#allocation7], 4
      %s48 = int_to_ptr.vmem [resolvable:$true] %s47
      %53 = dma.hbm_to_vmem [thread:$0]  %s4, 256, %s48, [#allocation6], 64, 64, 4
    $region21: #{tpu_custom_call.1} parent=1 // pred_fallthru
      _
    // Predicated region
    $region22: #{tpu_custom_call.1} parent=1 // pred_check
      _
    $region23: #{tpu_custom_call.1} parent=1 // pred_check_branch
      %55 = sbr.rel (0) target = $region25
    $region24: #{tpu_custom_call.1} parent=1 // pred_region
      _
    $region25: #{tpu_custom_call.1} parent=1 // pred_fallthru
      _
    // Predicated region
    $region26: #{tpu_custom_call.1} parent=1 // pred_check
      _
    $region27: #{tpu_custom_call.1} parent=1 // pred_check_branch
      %57 = sbr.rel (0) target = $region29
    $region28: #{tpu_custom_call.1} parent=1 // pred_region
      %58 = dma.done [#allocation3], 256
    $region29: #{tpu_custom_call.1} parent=1 // pred_fallthru
      _
    // Predicated region
    $region30: #{tpu_custom_call.1} parent=1 // pred_check
      _
    $region31: #{tpu_custom_call.1} parent=1 // pred_check_branch
      %60 = sbr.rel (0) target = $region33
    $region32: #{tpu_custom_call.1} parent=1 // pred_region
      %61 = dma.done [#allocation6], 64
    $region33: #{tpu_custom_call.1} parent=1 // pred_fallthru
      _
    // Predicated region
    $region34: #{tpu_custom_call.1} parent=1 // pred_check
      _
    $region35: #{tpu_custom_call.1} parent=1 // pred_check_branch
      %63 = sbr.rel (0) target = $region37
    $region36: #{tpu_custom_call.1} parent=1 // pred_region
      %64 = dma.done [#allocation6], 256
    $region37: #{tpu_custom_call.1} parent=1 // pred_fallthru
      _
    %v66 = vld [vmem:[#allocation2] sm:$0xff]
    %v67 = vld [vmem:[#allocation2 + $0x8] sm:$0xff]
    %v68 = vld [vmem:[%s2] sm:$0x1]
    %v69 = vld [vmem:[%s3] sm:$0x1]
    %v70 = vld [vmem:[#allocation7] sm:$0xf]
    %v71 = vld [vmem:[#allocation7 + $0x4] sm:$0xf]
    %v72 = vld [vmem:[#allocation7 + $0x8] sm:$0xf]
    %v73 = vld [vmem:[#allocation7 + $0xc] sm:$0xf]
    %v74 = vld [vmem:[%s5] sm:$0x1]
    %vm75 = vcmask 261120
    %v76 = vsel %vm75, %v66, 0.0
    %77 = vadd.xlane.f32.xlu0 %v76
    %v78 = vpop.xlane.xlu0 %77
    %v79 = vsel %vm75, %v67, 0.0
    %80 = vadd.xlane.f32.xlu0 %v79
    %v81 = vpop.xlane.xlu0 %80
    %v82 = vmul.f32 %v66, %v66
    %v83 = vmul.f32 %v67, %v67
    %v84 = vsel %vm75, %v82, 0.0
    %85 = vadd.xlane.f32.xlu0 %v84
    %v86 = vpop.xlane.xlu0 %85
    %v87 = vsel %vm75, %v83, 0.0
    %88 = vadd.xlane.f32.xlu0 %v87
    %v89 = vpop.xlane.xlu0 %88
    %v90 = vmul.f32 %v78, 0.03125
    %v91 = vmul.f32 %v81, 0.03125
    %v92 = vmul.f32 %v78, %v90
    %v93 = vmul.f32 %v81, %v91
    %v94 = vsub.f32 %v86, %v92
    %v95 = vsub.f32 %v89, %v93
    %v96 = vmul.f32 %v94, 0.032258064
    %v97 = vmul.f32 %v95, 0.032258064
    %v98 = vmax.f32 %v96, 0.0
    %v99 = vmax.f32 %v97, 0.0
    %v100 = vrsqrt.pop %v98
    %v101 = vmul.f32 %v98, %v100
    %vm102 = vcmp.eq.f32.partialorder %v98, inf
    %v103 = vsel %vm102, %v98, %v101
    %vm104 = vcmp.eq.f32.partialorder %v98, 0.0
    %v105 = vand.u32 %v98, 2147483648
    %v106 = vsel %vm104, %v105, %v103
    %v107 = vrsqrt.pop %v99
    %v108 = vmul.f32 %v99, %v107
    %vm109 = vcmp.eq.f32.partialorder %v99, inf
    %v110 = vsel %vm109, %v99, %v108
    %vm111 = vcmp.eq.f32.partialorder %v99, 0.0
    %v112 = vand.u32 %v99, 2147483648
    %v113 = vsel %vm111, %v112, %v110
    %v114 = vadd.f32 %v106, 1e-06
    %v115 = vadd.f32 %v113, 1e-06
    %v116 = vrcp.pop %v114
    %v117 = vmul.f32 1.0, %v116
    %v118 = vrcp.pop %v115
    %v119 = vmul.f32 1.0, %v118
    %v120 = vsub.f32 %v66, %v90
    %v121 = vsub.f32 %v67, %v91
    %v122 = vmul.f32 %v120, %v117
    %v123 = vmul.f32 %v121, %v119
    %v125 = vlaneseq
    %v126 = vshrl.u32 %v125, 7
    %v127 = vsub.s32 0, %v126
    %v128 = vrot.slane %v68, %v127
    %v130 = vmul.f32 %v128, %v122
    %v131 = vmul.f32 %v128, %v123
    %v133 = vlaneseq
    %v134 = vshrl.u32 %v133, 7
    %v135 = vsub.s32 0, %v134
    %v136 = vrot.slane %v69, %v135
    %v138 = vadd.f32 %v130, %v136
    %v139 = vadd.f32 %v131, %v136
    %v140 = vpack.c.bf16 %v139, %v138
    %v142 = vlaneseq
    %v143 = vshrl.u32 %v142, 7
    %v144 = vsub.s32 0, %v143
    %v145 = vrot.slane %v74, %v144
    %v151 = vunpack.c.l.b16 %v70
    %v152 = vunpack.c.l.b16 %v71
    %v153 = vunpack.c.l.b16 %v72
    %v154 = vunpack.c.l.b16 %v73
    %v155 = vpack.c.b16 %v152, %v151
    %v156 = vpack.c.b16 %v154, %v153
    %v160 = vsel %vm75, %v140, 0
    %162 = vmatprep.subr.bf16.mxu0 0
    %163 = vmatpush1.bf16.msra.mxu0 %v155
    %164 = vmatprep.subr.bf16.mxu0 0
    %165 = vmatpush1.bf16.msra.mxu0 %v156
    %166 = vmatprep.subr.bf16.mxu0 0
    %167 = vmatpush1.bf16.msra.mxu0 0
    %168 = vmatprep.subr.bf16.mxu0 0
    %169 = vmatpush1.bf16.msra.mxu0 0
    %170 = vmatprep.subr.bf16.mxu0 0
    %171 = vmatpush1.bf16.msra.mxu0 0
    %172 = vmatprep.subr.bf16.mxu0 0
    %173 = vmatpush1.bf16.msra.mxu0 0
    %174 = vmatprep.subr.bf16.mxu0 0
    %175 = vmatpush1.bf16.msra.mxu0 0
    %176 = vmatprep.subr.bf16.mxu0 0
    %177 = vmatpush1.bf16.msra.mxu0 0
    %178 = vmatprep.subr.bf16.mxu0 0
    %179 = vmatpush1.bf16.msra.mxu0 0
    %180 = vmatprep.subr.bf16.mxu0 0
    %181 = vmatpush1.bf16.msra.mxu0 0
    %182 = vmatprep.subr.bf16.mxu0 0
    %183 = vmatpush1.bf16.msra.mxu0 0
    %184 = vmatprep.subr.bf16.mxu0 0
    %185 = vmatpush1.bf16.msra.mxu0 0
    %186 = vmatprep.subr.bf16.mxu0 0
    %187 = vmatpush1.bf16.msra.mxu0 0
    %188 = vmatprep.subr.bf16.mxu0 0
    %189 = vmatpush1.bf16.msra.mxu0 0
    %190 = vmatprep.subr.bf16.mxu0 0
    %191 = vmatpush1.bf16.msra.mxu0 0
    %192 = vmatprep.subr.bf16.mxu0 0
    %193 = vmatpush1.bf16.msra.mxu0 0
    %194 = vmatprep.mubr.bf16.mxu0 0
    %195 = vmatmul.mubr.bf16.gmra.mrb[0].mxu0 %v160
    %v196 = vpop.f32.mrb[0].mxu0
    %v197 = vadd.f32 %v145, %v196
    %v198 = vpop.f32.mrb[0].mxu0
    %v199 = vpop.f32.mrb[0].mxu0
    %v200 = vadd.f32 %v145, %v199
    %v201 = vpop.f32.mrb[0].mxu0
    %202 = vdwg.mxu0
    %v203 = vld [vmem:[#allocation5] sm:$0x3]
    %v204 = vld [vmem:[#allocation5 + $0x2] sm:$0x3]
    %v205 = vunpack.c.0.s8 %v203
    %v206 = vunpack.c.0.s8 %v204
    %v207 = vand.u32 %v205, 255
    %v208 = vand.u32 %v206, 255
    %v209 = vcvt.s32.f32 %v207
    %v210 = vcvt.s32.f32 %v208
    %vm211 = vcmp.ge.f32.partialorder %v209, 26.0
    %vm212 = vcmp.ge.f32.partialorder %v210, 26.0
    %v213 = vmul.f32 %v197, 1.1111112
    %v214 = vmul.f32 %v200, 1.1111112
    %v215 = vsel %vm211, %v213, 0.0
    %v216 = vsel %vm212, %v214, 0.0
    %v217 = vadd.f32 %v66, %v215
    %v218 = vadd.f32 %v67, %v216
    %219 = vst.msk [vmem:[#allocation8] sm:$0xff] %vm75, %v217
    %220 = vst.msk [vmem:[#allocation8 + $0x8] sm:$0xff] %vm75, %v218
    // Predicated region
    $region38: #{tpu_custom_call.1} parent=1 // pred_check
      _
    $region39: #{tpu_custom_call.1} parent=1 // pred_check_branch
      %222 = sbr.rel (0) target = $region41
    $region40: #{tpu_custom_call.1} parent=1 // pred_region
      %s224 = ssub.s32 256, 256
      %225 = vsyncadd [#allocation4], %s224
      %s226 = sshll.u32 [#allocation8], 4
      %s227 = int_to_ptr.vmem [resolvable:$true] %s226
      %232 = dma.vmem_to_hbm [thread:$0]  %s227, 256, %s6, [#allocation4], 128, 128, 8
    $region41: #{tpu_custom_call.1} parent=1 // pred_fallthru
      _
    // Predicated region
    $region42: #{tpu_custom_call.1} parent=1 // pred_check
      _
    $region43: #{tpu_custom_call.1} parent=1 // pred_check_branch
      %234 = sbr.rel (0) target = $region45
    $region44: #{tpu_custom_call.1} parent=1 // pred_region
      %235 = dma.done [#allocation4], 256
    $region45: #{tpu_custom_call.1} parent=1 // pred_fallthru
      _
    %236 = vsyncpa [#allocation3], 1
    %237 = vsyncpa [#allocation6], 1
    %238 = vsyncpa [#allocation4], 1

</llo_original>
